<compile_context>
chip_gen: v6e
topology: v6e:2x2x1
jax: 0.10.0
libtpu: 0.0.40
codegen_flags: <defaults>
</compile_context>

<pallas_src>
import functools
import math

import jax
import jax.numpy as jnp
from jax.experimental import pallas as pl
from jax.experimental.pallas import tpu as pltpu


def _round_up(x, m):
    return ((x + m - 1) // m) * m


def _onehot_linear_relu_kernel(poses_ref, w_ref, out_ref, *, n_classes, pack, k_pad):
    # poses_ref: (tile, pack)             int32    (streamed)
    # w_ref:     (k_pad, pack*dim_emb)    float32  (resident: kron(I,W^T) + bias row)
    # out_ref:   (tile, pack*dim_emb)     out_dtype
    rows = poses_ref.shape[0]
    bias_col = pack * n_classes

    poses = poses_ref[...]                                            # (rows, pack)
    class_ids = jax.lax.broadcasted_iota(jnp.int32, (rows, k_pad), 1)

    # Bias is folded into the matmul: constant-1 column at `bias_col` multiplies
    # the bias row of w_ref.
    one_hot = (class_ids == bias_col).astype(jnp.float32)
    for j in range(pack):                                             # static unroll (pack <= 4)
        pj = poses[:, j:j + 1]                                        # (rows, 1)
        valid = jnp.logical_and(pj >= 0, pj < n_classes)              # pad (-1) / OOB -> zero row
        hit = jnp.logical_and(class_ids == pj + j * n_classes, valid)
        one_hot = one_hot + hit.astype(jnp.float32)

    # NOTE: exact parity with nn.Linear relies on the f32 MXU path keeping the
    # full mantissa of the (0/1)-selected weights; verified to 1e-5 on TPU.
    res = jnp.dot(one_hot, w_ref[...], preferred_element_type=jnp.float32)
    out_ref[...] = jnp.maximum(res, 0.0).astype(out_ref.dtype)


def one_hot_encoding_forward(poses, weight, bias, *, out_dtype=jnp.float32,
                             tile_rows=4096):
    """relu(one_hot(poses) @ weight.T + bias).

    poses: int array of any shape; weight: (dim_emb, n_classes); bias: (dim_emb,).
    out_dtype=jnp.float32 matches nn.Linear exactly; jnp.bfloat16 halves the
    dominant HBM writeback traffic when the consumer accepts it.
    """
    dim_emb, n_classes = weight.shape
    orig_shape = poses.shape
    poses_flat = poses.reshape(-1).astype(jnp.int32)
    n = poses_flat.shape[0]

    if n == 0:                                   # empty input: nothing to launch
        return jnp.zeros((*orig_shape, dim_emb), out_dtype)

    # Pack tokens so each output row fills 128 lanes (unmasked vst); fallback 1.
    # TODO(synk): when dim_emb does not divide 128 the output store degrades to
    # masked partial vst (correct, just not lane-dense).
    pack = 128 // dim_emb if (dim_emb <= 128 and 128 % dim_emb == 0) else 1

    # Minimum sublane granularity of the output tile (bf16 packs 2 rows/sublane).
    sub = 16 if jnp.dtype(out_dtype) == jnp.dtype(jnp.bfloat16) else 8

    rows = pl.cdiv(n, pack)
    rows_pad = _round_up(rows, sub)              # pad only to sublane granularity
    n_pack = rows_pad * pack

    # Tile: as large as tile_rows allows, but keep >= 2 grid steps whenever the
    # input permits so both v7x TensorCores get a share of the "parallel" axis.
    # Pallas masks the partial last block if tile does not divide rows_pad.
    tile = min(_round_up(tile_rows, sub), _round_up(pl.cdiv(rows_pad, 2), sub))
    tile = max(tile, sub)
    num_tiles = pl.cdiv(rows_pad, tile)

    if n_pack == n:
        poses_packed = poses_flat.reshape(rows_pad, pack)     # free, no copy
    else:
        poses_packed = (jnp.full((n_pack,), -1, jnp.int32)    # -1 -> zero one-hot row
                        .at[:n].set(poses_flat)
                        .reshape(rows_pad, pack))

    # Block-diagonal replicated weight kron(I_pack, W^T) + bias row, K padded to 8.
    w_t = weight.T.astype(jnp.float32)                        # (n_classes, dim_emb)
    w_blk = jnp.kron(jnp.eye(pack, dtype=jnp.float32), w_t)   # (pack*nc, pack*de)
    k_pad = _round_up(pack * n_classes + 1, 8)
    w_full = jnp.zeros((k_pad, pack * dim_emb), jnp.float32)
    w_full = w_full.at[: pack * n_classes, :].set(w_blk)
    w_full = w_full.at[pack * n_classes, :].set(
        jnp.tile(bias.astype(jnp.float32), pack))

    kernel = functools.partial(
        _onehot_linear_relu_kernel, n_classes=n_classes, pack=pack, k_pad=k_pad)

    out = pl.pallas_call(
        kernel,
        out_shape=jax.ShapeDtypeStruct((rows_pad, pack * dim_emb), out_dtype),
        grid=(num_tiles,),
        in_specs=[
            pl.BlockSpec((tile, pack), lambda i: (i, 0)),              # streamed
            pl.BlockSpec((k_pad, pack * dim_emb), lambda i: (0, 0)),   # resident
        ],
        out_specs=pl.BlockSpec((tile, pack * dim_emb), lambda i: (i, 0)),
        compiler_params=pltpu.CompilerParams(dimension_semantics=("parallel",)),
    )(poses_packed, w_full)

    # Row-major (rows_pad, pack*dim_emb) == (rows_pad*pack, dim_emb): free reshape.
    out = out.reshape(n_pack, dim_emb)
    if n_pack != n:
        out = out[:n]          # only on unaligned N (this slice is an XLA copy)
    return out.reshape(*orig_shape, dim_emb)


if __name__ == "__main__":
    # Module config (synthetic, deterministic init mimicking nn.Linear).
    n_classes = 16
    dim_emb = 32

    key = jax.random.PRNGKey(0)
    k_w, k_b, k_p1, k_p2, k_p3 = jax.random.split(key, 5)

    bound = 1.0 / math.sqrt(n_classes)
    weight = jax.random.uniform(
        k_w, (dim_emb, n_classes), jnp.float32, minval=-bound, maxval=bound
    )
    bias = jax.random.uniform(
        k_b, (dim_emb,), jnp.float32, minval=-bound, maxval=bound
    )

    def reference(p):
        oh = jax.nn.one_hot(p, n_classes, dtype=jnp.float32)
        return jax.nn.relu(oh @ weight.T + bias)

    # Small test consistent with the module's typical use.
    poses_small = jax.random.randint(k_p1, (2, 8), 0, n_classes, dtype=jnp.int32)
    out_small = jax.block_until_ready(one_hot_encoding_forward(poses_small, weight, bias))
    assert out_small.shape == (2, 8, dim_emb)
    assert jnp.allclose(out_small, reference(poses_small), atol=1e-5, rtol=1e-5)

    # Ragged medium test: 2-step parallel grid, partial last block, pad+slice path.
    poses_big = jax.random.randint(k_p2, (3, 2050), 0, n_classes, dtype=jnp.int32)
    out_big = jax.block_until_ready(one_hot_encoding_forward(poses_big, weight, bias))
    assert out_big.shape == (3, 2050, dim_emb)
    assert jnp.allclose(out_big, reference(poses_big), atol=1e-5, rtol=1e-5)

    # Aligned test: no padding and no post-kernel slice (single output write).
    poses_al = jax.random.randint(k_p3, (4, 1024), 0, n_classes, dtype=jnp.int32)
    out_al = jax.block_until_ready(one_hot_encoding_forward(poses_al, weight, bias))
    assert out_al.shape == (4, 1024, dim_emb)
    assert jnp.allclose(out_al, reference(poses_al), atol=1e-5, rtol=1e-5)

    # bf16 output path (halves HBM writeback); matmul still accumulates in f32.
    out_bf16 = jax.block_until_ready(
        one_hot_encoding_forward(poses_big, weight, bias, out_dtype=jnp.bfloat16))
    assert out_bf16.dtype == jnp.bfloat16
    assert jnp.allclose(out_bf16.astype(jnp.float32), reference(poses_big),
                        atol=1e-2, rtol=1e-2)

    print("KERNEL_OK")
</pallas_src>

<mosaic_0001>
module attributes {stable_mosaic.version = 11 : i64} {
  func.func @_onehot_linear_relu_kernel(%arg0: i32, %arg1: memref<8x4xi32, #tpu.memory_space<vmem>>, %arg2: memref<72x128xf32, #tpu.memory_space<vmem>>, %arg3: memref<8x128xf32, #tpu.memory_space<vmem>>) attributes {dimension_semantics = [#tpu.dimension_semantics<parallel>], iteration_bounds = array<i64: 1>, scalar_prefetch = 0 : i64, scratch_operands = 0 : i64, tpu.core_type = #tpu.core_type<tc>, window_params = [{transform_indices = @transform_0, window_bounds = array<i64: 8, 4>}, {pipeline_mode = #tpu.pipeline_mode<synchronous>, transform_indices = @transform_1, window_bounds = array<i64: 72, 128>}, {transform_indices = @transform_2, window_bounds = array<i64: 8, 128>}]} {
    %c0 = arith.constant 0 : index
    %c0_0 = arith.constant 0 : index
    %0 = vector.load %arg1[%c0, %c0_0] : memref<8x4xi32, #tpu.memory_space<vmem>>, vector<8x4xi32>
    %1 = tpu.iota {dimensions = array<i32: 1>} : vector<8x72xi32>
    %c64_i32 = arith.constant 64 : i32
    %2 = vector.broadcast %c64_i32 : i32 to vector<8x72xi32>
    %3 = arith.cmpi eq, %1, %2 : vector<8x72xi32>
    %4 = arith.extui %3 : vector<8x72xi1> to vector<8x72xi32>
    %5 = arith.sitofp %4 : vector<8x72xi32> to vector<8x72xf32>
    %6 = vector.extract_strided_slice %0 {offsets = [0, 0], sizes = [8, 1], strides = [1, 1]} : vector<8x4xi32> to vector<8x1xi32>
    %c0_i32 = arith.constant 0 : i32
    %7 = vector.broadcast %c0_i32 : i32 to vector<8x1xi32>
    %8 = arith.cmpi sge, %6, %7 : vector<8x1xi32>
    %c16_i32 = arith.constant 16 : i32
    %9 = vector.broadcast %c16_i32 : i32 to vector<8x1xi32>
    %10 = arith.cmpi slt, %6, %9 : vector<8x1xi32>
    %11 = arith.andi %8, %10 : vector<8x1xi1>
    %c0_i32_1 = arith.constant 0 : i32
    %12 = vector.broadcast %c0_i32_1 : i32 to vector<8x1xi32>
    %13 = arith.addi %6, %12 : vector<8x1xi32>
    %14 = vector.broadcast %13 : vector<8x1xi32> to vector<8x72xi32>
    %15 = arith.cmpi eq, %1, %14 : vector<8x72xi32>
    %16 = vector.broadcast %11 : vector<8x1xi1> to vector<8x72xi1>
    %17 = arith.andi %15, %16 : vector<8x72xi1>
    %18 = arith.extui %17 : vector<8x72xi1> to vector<8x72xi32>
    %19 = arith.sitofp %18 : vector<8x72xi32> to vector<8x72xf32>
    %20 = arith.addf %5, %19 : vector<8x72xf32>
    %21 = vector.extract_strided_slice %0 {offsets = [0, 1], sizes = [8, 1], strides = [1, 1]} : vector<8x4xi32> to vector<8x1xi32>
    %c0_i32_2 = arith.constant 0 : i32
    %22 = vector.broadcast %c0_i32_2 : i32 to vector<8x1xi32>
    %23 = arith.cmpi sge, %21, %22 : vector<8x1xi32>
    %c16_i32_3 = arith.constant 16 : i32
    %24 = vector.broadcast %c16_i32_3 : i32 to vector<8x1xi32>
    %25 = arith.cmpi slt, %21, %24 : vector<8x1xi32>
    %26 = arith.andi %23, %25 : vector<8x1xi1>
    %c16_i32_4 = arith.constant 16 : i32
    %27 = vector.broadcast %c16_i32_4 : i32 to vector<8x1xi32>
    %28 = arith.addi %21, %27 : vector<8x1xi32>
    %29 = vector.broadcast %28 : vector<8x1xi32> to vector<8x72xi32>
    %30 = arith.cmpi eq, %1, %29 : vector<8x72xi32>
    %31 = vector.broadcast %26 : vector<8x1xi1> to vector<8x72xi1>
    %32 = arith.andi %30, %31 : vector<8x72xi1>
    %33 = arith.extui %32 : vector<8x72xi1> to vector<8x72xi32>
    %34 = arith.sitofp %33 : vector<8x72xi32> to vector<8x72xf32>
    %35 = arith.addf %20, %34 : vector<8x72xf32>
    %36 = vector.extract_strided_slice %0 {offsets = [0, 2], sizes = [8, 1], strides = [1, 1]} : vector<8x4xi32> to vector<8x1xi32>
    %c0_i32_5 = arith.constant 0 : i32
    %37 = vector.broadcast %c0_i32_5 : i32 to vector<8x1xi32>
    %38 = arith.cmpi sge, %36, %37 : vector<8x1xi32>
    %c16_i32_6 = arith.constant 16 : i32
    %39 = vector.broadcast %c16_i32_6 : i32 to vector<8x1xi32>
    %40 = arith.cmpi slt, %36, %39 : vector<8x1xi32>
    %41 = arith.andi %38, %40 : vector<8x1xi1>
    %c32_i32 = arith.constant 32 : i32
    %42 = vector.broadcast %c32_i32 : i32 to vector<8x1xi32>
    %43 = arith.addi %36, %42 : vector<8x1xi32>
    %44 = vector.broadcast %43 : vector<8x1xi32> to vector<8x72xi32>
    %45 = arith.cmpi eq, %1, %44 : vector<8x72xi32>
    %46 = vector.broadcast %41 : vector<8x1xi1> to vector<8x72xi1>
    %47 = arith.andi %45, %46 : vector<8x72xi1>
    %48 = arith.extui %47 : vector<8x72xi1> to vector<8x72xi32>
    %49 = arith.sitofp %48 : vector<8x72xi32> to vector<8x72xf32>
    %50 = arith.addf %35, %49 : vector<8x72xf32>
    %51 = vector.extract_strided_slice %0 {offsets = [0, 3], sizes = [8, 1], strides = [1, 1]} : vector<8x4xi32> to vector<8x1xi32>
    %c0_i32_7 = arith.constant 0 : i32
    %52 = vector.broadcast %c0_i32_7 : i32 to vector<8x1xi32>
    %53 = arith.cmpi sge, %51, %52 : vector<8x1xi32>
    %c16_i32_8 = arith.constant 16 : i32
    %54 = vector.broadcast %c16_i32_8 : i32 to vector<8x1xi32>
    %55 = arith.cmpi slt, %51, %54 : vector<8x1xi32>
    %56 = arith.andi %53, %55 : vector<8x1xi1>
    %c48_i32 = arith.constant 48 : i32
    %57 = vector.broadcast %c48_i32 : i32 to vector<8x1xi32>
    %58 = arith.addi %51, %57 : vector<8x1xi32>
    %59 = vector.broadcast %58 : vector<8x1xi32> to vector<8x72xi32>
    %60 = arith.cmpi eq, %1, %59 : vector<8x72xi32>
    %61 = vector.broadcast %56 : vector<8x1xi1> to vector<8x72xi1>
    %62 = arith.andi %60, %61 : vector<8x72xi1>
    %63 = arith.extui %62 : vector<8x72xi1> to vector<8x72xi32>
    %64 = arith.sitofp %63 : vector<8x72xi32> to vector<8x72xf32>
    %65 = arith.addf %50, %64 : vector<8x72xf32>
    %c0_9 = arith.constant 0 : index
    %c0_10 = arith.constant 0 : index
    %66 = vector.load %arg2[%c0_9, %c0_10] : memref<72x128xf32, #tpu.memory_space<vmem>>, vector<72x128xf32>
    %cst = arith.constant dense<0.000000e+00> : vector<8x128xf32>
    %67 = tpu.matmul %65, %66, %cst {dimension_numbers = #tpu.dot_dimension_numbers<[1], [0], [0], [1], [0, 0, 1, 1], [], []>} : vector<8x72xf32>, vector<72x128xf32>, vector<8x128xf32> -> vector<8x128xf32>
    %cst_11 = arith.constant 0.000000e+00 : f32
    %68 = vector.broadcast %cst_11 : f32 to vector<8x128xf32>
    %69 = arith.maximumf %67, %68 : vector<8x128xf32>
    %c0_12 = arith.constant 0 : index
    %c0_13 = arith.constant 0 : index
    %70 = vector.load %arg3[%c0_12, %c0_13] : memref<8x128xf32, #tpu.memory_space<vmem>>, vector<8x128xf32>
    tpu.vector_store %arg3[%c0_12, %c0_13], %69 {strides = array<i32>} : memref<8x128xf32, #tpu.memory_space<vmem>>, vector<8x128xf32>,
    return
  }
  func.func @transform_0(%arg0: i32) -> (i32, i32) {
    %c0_i32 = arith.constant 0 : i32
    %c0_i32_0 = arith.constant 0 : i32
    return %arg0, %c0_i32 : i32, i32
  }
  func.func @transform_1(%arg0: i32) -> (i32, i32) {
    %c0_i32 = arith.constant 0 : i32
    %c0_i32_0 = arith.constant 0 : i32
    %c0_i32_1 = arith.constant 0 : i32
    return %c0_i32, %c0_i32_0 : i32, i32
  }
  func.func @transform_2(%arg0: i32) -> (i32, i32) {
    %c0_i32 = arith.constant 0 : i32
    %c0_i32_0 = arith.constant 0 : i32
    return %arg0, %c0_i32 : i32, i32
  }
}

</mosaic_0001>

<llo_original>
// kernel: tpu_custom_call.1
$region0: #{tpu_custom_call.1}
  #allocation0 [shape = 'u32[]', space=smem, size = 0x4, offset = 0x4, fixed_abs, tag = 'smem constant byte address 0x4 - core index']
  #allocation1 [shape = 'u32[144,128]{1,0:T(1,128)}', space=vmem, size = 0x12000, scoped, tag = 'internal scratch']
  %s0 = inlined_call_operand.vmem [shape: s32[8,4], index: 0, kind: input, shape index: {}]
  %s1 = inlined_call_operand.hbm [shape: f32[72,128], index: 1, kind: input, shape index: {}]
  %s2 = inlined_call_operand.hbm [shape: f32[8,128], index: 2, kind: output, shape index: {}]
  %s3 = sld [smem:[#allocation0]]
  $region22: #{tpu_custom_call.1} parent=0
    _
  %s5 = ssub.s32 1, %s3
  %s6 = scalar_select 0, %s5, %s3
  $region1: #{tpu_custom_call.1} parent=0
    #allocation2 [shape = 'u8[36864]{0}', space=vmem, size = 0x9000, scoped, tag = 'input window, operand 1, single buffered']
    #allocation3 [shape = 's32[1]{0}', space=sflag, size = 0x4, scoped, tag = 'scoped memory for tpu_custom_call.1']
    #allocation4 [shape = 's32[1]{0}', space=sflag, size = 0x4, scoped, tag = 'scoped memory for tpu_custom_call.1']
    #allocation5 [shape = 'u8[4096]{0}', space=vmem, size = 0x1000, scoped, tag = 'output window, operand 0, single buffered']
    %7 = vsyncpa [#allocation3], 0
    %8 = vsyncpa [#allocation4], 0
    // Predicated region
    $region2: #{tpu_custom_call.1} parent=1 // pred_check
      _
    $region3: #{tpu_custom_call.1} parent=1 // pred_check_branch
      %10 = sbr.rel (0) target = $region5
    $region4: #{tpu_custom_call.1} parent=1 // pred_region
      _
    $region5: #{tpu_custom_call.1} parent=1 // pred_fallthru
      _
    // Predicated region
    $region6: #{tpu_custom_call.1} parent=1 // pred_check
      _
    $region7: #{tpu_custom_call.1} parent=1 // pred_check_branch
      %12 = sbr.rel (0) target = $region9
    $region8: #{tpu_custom_call.1} parent=1 // pred_region
      %s14 = ssub.s32 1152, 1152
      %15 = vsyncadd [#allocation3], %s14
      %s16 = sshll.u32 [#allocation2], 4
      %s17 = int_to_ptr.vmem [resolvable:$true] %s16
      %22 = dma.hbm_to_vmem [thread:$0]  %s1, 1152, %s17, [#allocation3], 128, 128, 8
    $region9: #{tpu_custom_call.1} parent=1 // pred_fallthru
      _
    // Predicated region
    $region10: #{tpu_custom_call.1} parent=1 // pred_check
      _
    $region11: #{tpu_custom_call.1} parent=1 // pred_check_branch
      %24 = sbr.rel (0) target = $region13
    $region12: #{tpu_custom_call.1} parent=1 // pred_region
      %25 = dma.done [#allocation3], 1152
    $region13: #{tpu_custom_call.1} parent=1 // pred_fallthru
      _
    %v26 = vld [vmem:[%s0] sm:$0xff]
    %v27 = vlaneseq
    %v28 = vand.u32 %v27, 127
    %vm29 = vcmp.eq.s32.totalorder %v28, 64
    %v30 = vsel %vm29, 1, 0
    %v31 = vcvt.s32.f32 %v30
    %vm32 = vcmp.ge.s32.totalorder %v26, 0
    %vm33 = vcmp.lt.s32.totalorder %v26, 16
    %vm34 = vmand %vm32, %vm33
    %35 = vset.pattern.permute.xlu0 0
    %36 = vperm.xlu0 %35, %v26
    %v37 = vpop.permute.xlu0 %36
    %vm38 = vcmp.eq.s32.totalorder %v28, %v37
    %v39 = vsel %vm34, 1, 0
    %40 = vset.pattern.permute.xlu0 0
    %41 = vperm.xlu0 %40, %v39
    %v42 = vpop.permute.xlu0 %41
    %vm43 = vcmp.eq.s32.totalorder %v42, 1
    %vm44 = vmand %vm38, %vm43
    %v45 = vsel %vm44, 1, 0
    %v46 = vcvt.s32.f32 %v45
    %v47 = vadd.f32 %v31, %v46
    %v48 = vadd.s32 %v26, 16
    %49 = vset.pattern.permute.xlu0 1
    %50 = vperm.xlu0 %49, %v48
    %v51 = vpop.permute.xlu0 %50
    %vm52 = vcmp.eq.s32.totalorder %v28, %v51
    %53 = vset.pattern.permute.xlu0 1
    %54 = vperm.xlu0 %53, %v39
    %v55 = vpop.permute.xlu0 %54
    %vm56 = vcmp.eq.s32.totalorder %v55, 1
    %vm57 = vmand %vm52, %vm56
    %v58 = vsel %vm57, 1, 0
    %v59 = vcvt.s32.f32 %v58
    %v60 = vadd.f32 %v47, %v59
    %v61 = vadd.s32 %v26, 32
    %62 = vset.pattern.permute.xlu0 2
    %63 = vperm.xlu0 %62, %v61
    %v64 = vpop.permute.xlu0 %63
    %vm65 = vcmp.eq.s32.totalorder %v28, %v64
    %66 = vset.pattern.permute.xlu0 2
    %67 = vperm.xlu0 %66, %v39
    %v68 = vpop.permute.xlu0 %67
    %vm69 = vcmp.eq.s32.totalorder %v68, 1
    %vm70 = vmand %vm65, %vm69
    %v71 = vsel %vm70, 1, 0
    %v72 = vcvt.s32.f32 %v71
    %v73 = vadd.f32 %v60, %v72
    %v74 = vadd.s32 %v26, 48
    %75 = vset.pattern.permute.xlu0 3
    %76 = vperm.xlu0 %75, %v74
    %v77 = vpop.permute.xlu0 %76
    %vm78 = vcmp.eq.s32.totalorder %v28, %v77
    %79 = vset.pattern.permute.xlu0 3
    %80 = vperm.xlu0 %79, %v39
    %v81 = vpop.permute.xlu0 %80
    %vm82 = vcmp.eq.s32.totalorder %v81, 1
    %vm83 = vmand %vm78, %vm82
    %v84 = vsel %vm83, 1, 0
    %v85 = vcvt.s32.f32 %v84
    %v86 = vadd.f32 %v73, %v85
    %v87 = vld [vmem:[#allocation2] sm:$0xff]
    %v88 = vld [vmem:[#allocation2 + $0x8] sm:$0xff]
    %v89 = vld [vmem:[#allocation2 + $0x10] sm:$0xff]
    %v90 = vld [vmem:[#allocation2 + $0x18] sm:$0xff]
    %v91 = vld [vmem:[#allocation2 + $0x20] sm:$0xff]
    %v92 = vld [vmem:[#allocation2 + $0x28] sm:$0xff]
    %v93 = vld [vmem:[#allocation2 + $0x30] sm:$0xff]
    %v94 = vld [vmem:[#allocation2 + $0x38] sm:$0xff]
    %v95 = vld [vmem:[#allocation2 + $0x40] sm:$0xff]
    %vm96 = vcmask 588800
    %v98 = vsel %vm96, %v86, 0
    %100 = vmatprep.subr.mxu0 0.0
    %101 = vmatpush1.msra.mxu0 0.0
    %102 = vmatprep.subr.mxu0 0.0
    %103 = vmatpush1.msra.mxu0 0.0
    %104 = vmatprep.subr.mxu0 0.0
    %105 = vmatpush1.msra.mxu0 0.0
    %106 = vmatprep.subr.mxu0 0.0
    %107 = vmatpush1.msra.mxu0 0.0
    %108 = vmatprep.subr.mxu0 0.0
    %109 = vmatpush1.msra.mxu0 0.0
    %110 = vmatprep.subr.mxu0 0.0
    %111 = vmatpush1.msra.mxu0 0.0
    %112 = vmatprep.subr.mxu0 0.0
    %113 = vmatpush1.msra.mxu0 0.0
    %114 = vmatprep.subr.mxu0 0.0
    %115 = vmatpush1.msra.mxu0 %v95
    %116 = vmatprep.subr.mxu0 0.0
    %117 = vmatpush1.msra.mxu0 %v94
    %118 = vmatprep.subr.mxu0 0.0
    %119 = vmatpush1.msra.mxu0 %v93
    %120 = vmatprep.subr.mxu0 0.0
    %121 = vmatpush1.msra.mxu0 %v92
    %122 = vmatprep.subr.mxu0 0.0
    %123 = vmatpush1.msra.mxu0 %v91
    %124 = vmatprep.subr.mxu0 0.0
    %125 = vmatpush1.msra.mxu0 %v90
    %126 = vmatprep.subr.mxu0 0.0
    %127 = vmatpush1.msra.mxu0 %v89
    %128 = vmatprep.subr.mxu0 0.0
    %129 = vmatpush1.msra.mxu0 %v88
    %130 = vmatprep.subr.mxu0 0.0
    %131 = vmatpush1.msra.mxu0 %v87
    %132 = vmatprep.subr.mxu0 0.0
    %133 = vmatpush2.msra.mxu0 0.0
    %134 = vmatprep.subr.mxu0 0.0
    %135 = vmatpush2.msra.mxu0 0.0
    %136 = vmatprep.subr.mxu0 0.0
    %137 = vmatpush2.msra.mxu0 0.0
    %138 = vmatprep.subr.mxu0 0.0
    %139 = vmatpush2.msra.mxu0 0.0
    %140 = vmatprep.subr.mxu0 0.0
    %141 = vmatpush2.msra.mxu0 0.0
    %142 = vmatprep.subr.mxu0 0.0
    %143 = vmatpush2.msra.mxu0 0.0
    %144 = vmatprep.subr.mxu0 0.0
    %145 = vmatpush2.msra.mxu0 0.0
    %146 = vmatprep.subr.mxu0 0.0
    %147 = vmatpush2.msra.mxu0 0.0
    %148 = vmatprep.subr.mxu0 0.0
    %149 = vmatpush2.msra.mxu0 0.0
    %150 = vmatprep.subr.mxu0 0.0
    %151 = vmatpush2.msra.mxu0 0.0
    %152 = vmatprep.subr.mxu0 0.0
    %153 = vmatpush2.msra.mxu0 0.0
    %154 = vmatprep.subr.mxu0 0.0
    %155 = vmatpush2.msra.mxu0 0.0
    %156 = vmatprep.subr.mxu0 0.0
    %157 = vmatpush2.msra.mxu0 0.0
    %158 = vmatprep.subr.mxu0 0.0
    %159 = vmatpush2.msra.mxu0 0.0
    %160 = vmatprep.subr.mxu0 0.0
    %161 = vmatpush2.msra.mxu0 0.0
    %162 = vmatprep.subr.mxu0 0.0
    %163 = vmatpush2.msra.mxu0 0.0
    %164 = vmatprep.mubr.f32.mxu0 0.0
    %165 = vmatmul.mubr.f32.gmra.mxu0 %v98
    %v166 = vpop.f32.mrf.mxu0
    %v167 = vadd.f32 0.0, %v166
    %v168 = vpop.f32.mrf.mxu0
    %169 = vdwg.mxu0
    %v170 = vmax.f32 %v167, 0.0
    %171 = vst [vmem:[#allocation5] sm:$0xff] %v170
    // Predicated region
    $region14: #{tpu_custom_call.1} parent=1 // pred_check
      _
    $region15: #{tpu_custom_call.1} parent=1 // pred_check_branch
      %173 = sbr.rel (0) target = $region17
    $region16: #{tpu_custom_call.1} parent=1 // pred_region
      %s175 = ssub.s32 128, 128
      %176 = vsyncadd [#allocation4], %s175
      %s178 = sshll.u32 [#allocation5], 4
      %s179 = int_to_ptr.vmem [resolvable:$true] %s178
      %181 = dma.vmem_to_hbm [thread:$0]  %s179, 128, %s2, [#allocation4]
    $region17: #{tpu_custom_call.1} parent=1 // pred_fallthru
      _
    // Predicated region
    $region18: #{tpu_custom_call.1} parent=1 // pred_check
      _
    $region19: #{tpu_custom_call.1} parent=1 // pred_check_branch
      %183 = sbr.rel (0) target = $region21
    $region20: #{tpu_custom_call.1} parent=1 // pred_region
      %184 = dma.done [#allocation4], 128
    $region21: #{tpu_custom_call.1} parent=1 // pred_fallthru
      _
    %185 = vsyncpa [#allocation3], 1
    %186 = vsyncpa [#allocation4], 1

</llo_original>
